<compile_context>
chip_gen: v5e
topology: v5e:2x2
jax: 0.10.0
libtpu: 0.0.40
codegen_flags: <defaults>
</compile_context>

<pallas_src>
import jax
import jax.numpy as jnp
from jax.experimental import pallas as pl
from jax.experimental.pallas import tpu as pltpu

HIDDEN = 200       # logical hidden width (matches the PyTorch module)
HIDDEN_PAD = 256   # padded hidden width (multiple of 128 / full MXU width)
TILE_B_DEFAULT = 2048


def _round_up(n, m):
    return ((n + m - 1) // m) * m


def val_kernel(x_ref, w1_ref, b1_ref, w2_ref, b2_ref, w3_ref, b3_ref, o_ref):
    # x_ref: (tile_b, dim_in) in its native (f32) dtype; cast here on the VPU
    # (hidden under MXU work) instead of a separate HBM pass in the wrapper.
    x = x_ref[...].astype(w1_ref.dtype)

    # Layer 1: MXU matmul (bf16 or f32 operands), f32 accumulate; bias+ReLU on VPU.
    h1 = jnp.dot(x, w1_ref[...], preferred_element_type=jnp.float32) + b1_ref[...]
    h1 = jnp.maximum(h1, 0.0)

    # Layer 2: cast activations to the weight dtype for the bf16 MXU path
    # (no-op for f32); accumulate in f32.
    h2 = jnp.dot(h1.astype(w2_ref.dtype), w2_ref[...],
                 preferred_element_type=jnp.float32) + b2_ref[...]
    h2 = jnp.maximum(h2, 0.0)

    # Layer 3 (out_features == 1): VPU multiply + XLU lane reduce; b3 scalar from SMEM.
    w3 = w3_ref[...].astype(jnp.float32)
    out = jnp.sum(h2 * w3, axis=-1) + b3_ref[0, 0]          # (tile_b,)

    # Lane-dense store: one (1, 1, tile_b) row per grid step (no 1-lane masked stores).
    o_ref[...] = out.reshape(o_ref.shape).astype(o_ref.dtype)


def val_forward(x, packed_params, *, tile_b=TILE_B_DEFAULT):
    """Forward pass. `packed_params` comes from `pack_params`."""
    w1, b1, w2, b2, w3_row, b3 = packed_params
    B, dim_in = x.shape

    # Requested tile rounded to a multiple of 16 (bf16 packs 2 rows/sublane).
    max_tile = _round_up(max(int(tile_b), 16), 16)

    if B <= 32:
        # Tiny batch: a single block covering the whole batch. Block dims equal the
        # array dims, which is always layout-legal, and splitting is not worth it.
        tile_b = B
    else:
        # Large batch: 16-aligned tiles, capped so the grid has >= 2 steps (v7x
        # megacore gets both TensorCores busy). Last block may be partial — rows
        # are independent and the extra output rows are discarded below.
        tile_b = min(max_tile, _round_up(pl.cdiv(B, 2), 16))
    num_tiles = pl.cdiv(B, tile_b)

    bytes_accessed = (
        B * dim_in * x.dtype.itemsize                      # x stream (no pad copy)
        + num_tiles * tile_b * 4                           # output rows
        + w1.size * w1.dtype.itemsize
        + w2.size * w2.dtype.itemsize
        + w3_row.size * w3_row.dtype.itemsize
        + (b1.size + b2.size + b3.size) * 4
    )
    flops = 2 * num_tiles * tile_b * (
        dim_in * HIDDEN_PAD + HIDDEN_PAD * HIDDEN_PAD + HIDDEN_PAD)

    out_rows = pl.pallas_call(
        val_kernel,
        out_shape=jax.ShapeDtypeStruct((num_tiles, 1, tile_b), jnp.float32),
        grid=(num_tiles,),
        in_specs=[
            pl.BlockSpec((tile_b, dim_in), lambda i: (i, 0)),            # x (tiled)
            pl.BlockSpec((dim_in, HIDDEN_PAD), lambda i: (0, 0)),        # w1 (resident)
            pl.BlockSpec((1, HIDDEN_PAD), lambda i: (0, 0)),             # b1
            pl.BlockSpec((HIDDEN_PAD, HIDDEN_PAD), lambda i: (0, 0)),    # w2
            pl.BlockSpec((1, HIDDEN_PAD), lambda i: (0, 0)),             # b2
            pl.BlockSpec((1, HIDDEN_PAD), lambda i: (0, 0)),             # w3 row
            pl.BlockSpec(memory_space=pltpu.SMEM),                       # b3 scalar
        ],
        out_specs=pl.BlockSpec((1, 1, tile_b), lambda i: (i, 0, 0)),     # lane-dense
        compiler_params=pltpu.CompilerParams(
            dimension_semantics=("parallel",),
            vmem_limit_bytes=32 * 1024 * 1024,
        ),
        cost_estimate=pl.CostEstimate(
            flops=flops, transcendentals=0, bytes_accessed=bytes_accessed),
    )(x, w1, b1, w2, b2, w3_row, b3)

    # (num_tiles, 1, tile_b) -> (B, 1); rows past B (partial last tile) are discarded.
    return out_rows.reshape(num_tiles * tile_b)[:B].reshape(B, 1)


def init_params(key, dim_in):
    # Deterministic init mimicking PyTorch nn.Linear default:
    # U(-1/sqrt(fan_in), 1/sqrt(fan_in)) for both weight and bias.
    # Weights stored [in_features, out_features] (== PyTorch W.T).
    ks = jax.random.split(key, 6)

    def linear(kw, kb, fan_in, fan_out):
        bound = 1.0 / jnp.sqrt(jnp.float32(fan_in))
        w = jax.random.uniform(kw, (fan_in, fan_out), jnp.float32, -bound, bound)
        b = jax.random.uniform(kb, (1, fan_out), jnp.float32, -bound, bound)
        return w, b

    w1, b1 = linear(ks[0], ks[1], dim_in, HIDDEN)
    w2, b2 = linear(ks[2], ks[3], HIDDEN, HIDDEN)
    w3, b3 = linear(ks[4], ks[5], HIDDEN, 1)
    return (w1, b1, w2, b2, w3, b3)


def pack_params(params, matmul_dtype=jnp.bfloat16):
    """Zero-pad HIDDEN 200->256, lay out w3 as a [1, 256] row, b3 as a (1, 1) scalar.

    Zero padding is exact: padded h1/h2 columns stay 0 through bias+ReLU and padded
    w3 entries contribute 0 to the final reduce.  Matmul operands default to bf16
    (MXU-native on v5e/v6e/v7x; ~3x fewer passes than f32); biases stay f32 and all
    accumulation is f32.  Pass matmul_dtype=jnp.float32 for an exact reference path.
    """
    w1, b1, w2, b2, w3, b3 = params
    dim_in = w1.shape[0]

    w1p = jnp.zeros((dim_in, HIDDEN_PAD), jnp.float32).at[:, :HIDDEN].set(w1)
    b1p = jnp.zeros((1, HIDDEN_PAD), jnp.float32).at[:, :HIDDEN].set(b1)
    w2p = jnp.zeros((HIDDEN_PAD, HIDDEN_PAD), jnp.float32).at[:HIDDEN, :HIDDEN].set(w2)
    b2p = jnp.zeros((1, HIDDEN_PAD), jnp.float32).at[:, :HIDDEN].set(b2)
    w3p = jnp.zeros((1, HIDDEN_PAD), jnp.float32).at[0, :HIDDEN].set(w3[:, 0])
    b3p = jnp.reshape(b3, (1, 1)).astype(jnp.float32)

    return (w1p.astype(matmul_dtype), b1p,
            w2p.astype(matmul_dtype), b2p,
            w3p.astype(matmul_dtype), b3p)


def val_reference(x, params):
    w1, b1, w2, b2, w3, b3 = params
    h1 = jnp.maximum(x @ w1 + b1, 0.0)
    h2 = jnp.maximum(h1 @ w2 + b2, 0.0)
    return h2 @ w3 + b3


if __name__ == "__main__":
    key = jax.random.PRNGKey(0)
    k_param, k_x, k_x2 = jax.random.split(key, 3)

    dim_in = 24   # BipedalWalker observation dim
    batch = 8

    params = init_params(k_param, dim_in)
    x = jax.random.normal(k_x, (batch, dim_in), jnp.float32)
    ref = val_reference(x, params)

    # f32 path (bit-for-bit comparable to the reference), tiny single-block batch.
    packed_f32 = pack_params(params, jnp.float32)
    out = jax.block_until_ready(val_forward(x, packed_f32))
    assert out.shape == (batch, 1), out.shape
    assert jnp.allclose(out, ref, atol=1e-5, rtol=1e-5), (out, ref)

    # bf16 MXU path (default packing): bf16 weights, f32 accumulate + elementwise.
    packed_bf16 = pack_params(params)
    out_bf16 = jax.block_until_ready(val_forward(x, packed_bf16))
    assert out_bf16.shape == (batch, 1), out_bf16.shape
    assert jnp.allclose(out_bf16, ref, atol=1.5e-1, rtol=5e-2), (out_bf16, ref)

    # Multi-tile path with a partial last block (no jnp.pad of x).
    batch2 = 300
    x2 = jax.random.normal(k_x2, (batch2, dim_in), jnp.float32)
    ref2 = val_reference(x2, params)
    out2 = jax.block_until_ready(val_forward(x2, packed_bf16))
    assert out2.shape == (batch2, 1), out2.shape
    assert jnp.allclose(out2, ref2, atol=1.5e-1, rtol=5e-2), (out2, ref2)

    out2_f32 = jax.block_until_ready(val_forward(x2, packed_f32))
    assert jnp.allclose(out2_f32, ref2, atol=1e-5, rtol=1e-5), (out2_f32, ref2)

    print("KERNEL_OK")
</pallas_src>

<mosaic_0001>
module attributes {stable_mosaic.version = 11 : i64} {
  func.func @val_kernel(%arg0: i32, %arg1: memref<8x24xf32, #tpu.memory_space<vmem>>, %arg2: memref<24x256xf32, #tpu.memory_space<vmem>>, %arg3: memref<1x256xf32, #tpu.memory_space<vmem>>, %arg4: memref<256x256xf32, #tpu.memory_space<vmem>>, %arg5: memref<1x256xf32, #tpu.memory_space<vmem>>, %arg6: memref<1x256xf32, #tpu.memory_space<vmem>>, %arg7: memref<1x1xf32, #tpu.memory_space<smem>>, %arg8: memref<1x1x8xf32, #tpu.memory_space<vmem>>) attributes {dimension_semantics = [#tpu.dimension_semantics<parallel>], iteration_bounds = array<i64: 1>, scalar_prefetch = 0 : i64, scratch_operands = 0 : i64, tpu.core_type = #tpu.core_type<tc>, window_params = [{transform_indices = @transform_0, window_bounds = array<i64: 8, 24>}, {pipeline_mode = #tpu.pipeline_mode<synchronous>, transform_indices = @transform_1, window_bounds = array<i64: 24, 256>}, {pipeline_mode = #tpu.pipeline_mode<synchronous>, transform_indices = @transform_2, window_bounds = array<i64: 1, 256>}, {pipeline_mode = #tpu.pipeline_mode<synchronous>, transform_indices = @transform_3, window_bounds = array<i64: 256, 256>}, {pipeline_mode = #tpu.pipeline_mode<synchronous>, transform_indices = @transform_4, window_bounds = array<i64: 1, 256>}, {pipeline_mode = #tpu.pipeline_mode<synchronous>, transform_indices = @transform_5, window_bounds = array<i64: 1, 256>}, {transform_indices = @transform_6, window_bounds = array<i64: 1, 1>}, {transform_indices = @transform_7, window_bounds = array<i64: 1, 1, 8>}]} {
    %c0 = arith.constant 0 : index
    %c0_0 = arith.constant 0 : index
    %0 = vector.load %arg1[%c0, %c0_0] : memref<8x24xf32, #tpu.memory_space<vmem>>, vector<8x24xf32>
    %c0_1 = arith.constant 0 : index
    %c0_2 = arith.constant 0 : index
    %1 = vector.load %arg2[%c0_1, %c0_2] : memref<24x256xf32, #tpu.memory_space<vmem>>, vector<24x256xf32>
    %cst = arith.constant dense<0.000000e+00> : vector<8x256xf32>
    %2 = tpu.matmul %0, %1, %cst {dimension_numbers = #tpu.dot_dimension_numbers<[1], [0], [0], [1], [0, 0, 1, 1], [], []>} : vector<8x24xf32>, vector<24x256xf32>, vector<8x256xf32> -> vector<8x256xf32>
    %c0_3 = arith.constant 0 : index
    %c0_4 = arith.constant 0 : index
    %3 = vector.load %arg3[%c0_3, %c0_4] : memref<1x256xf32, #tpu.memory_space<vmem>>, vector<1x256xf32>
    %4 = vector.broadcast %3 : vector<1x256xf32> to vector<8x256xf32>
    %5 = arith.addf %2, %4 : vector<8x256xf32>
    %cst_5 = arith.constant 0.000000e+00 : f32
    %6 = vector.broadcast %cst_5 : f32 to vector<8x256xf32>
    %7 = arith.maximumf %5, %6 : vector<8x256xf32>
    %c0_6 = arith.constant 0 : index
    %c0_7 = arith.constant 0 : index
    %8 = vector.load %arg4[%c0_6, %c0_7] : memref<256x256xf32, #tpu.memory_space<vmem>>, vector<256x256xf32>
    %cst_8 = arith.constant dense<0.000000e+00> : vector<8x256xf32>
    %9 = tpu.matmul %7, %8, %cst_8 {dimension_numbers = #tpu.dot_dimension_numbers<[1], [0], [0], [1], [0, 0, 1, 1], [], []>} : vector<8x256xf32>, vector<256x256xf32>, vector<8x256xf32> -> vector<8x256xf32>
    %c0_9 = arith.constant 0 : index
    %c0_10 = arith.constant 0 : index
    %10 = vector.load %arg5[%c0_9, %c0_10] : memref<1x256xf32, #tpu.memory_space<vmem>>, vector<1x256xf32>
    %11 = vector.broadcast %10 : vector<1x256xf32> to vector<8x256xf32>
    %12 = arith.addf %9, %11 : vector<8x256xf32>
    %cst_11 = arith.constant 0.000000e+00 : f32
    %13 = vector.broadcast %cst_11 : f32 to vector<8x256xf32>
    %14 = arith.maximumf %12, %13 : vector<8x256xf32>
    %c0_12 = arith.constant 0 : index
    %c0_13 = arith.constant 0 : index
    %15 = vector.load %arg6[%c0_12, %c0_13] : memref<1x256xf32, #tpu.memory_space<vmem>>, vector<1x256xf32>
    %16 = vector.broadcast %15 : vector<1x256xf32> to vector<8x256xf32>
    %17 = arith.mulf %14, %16 : vector<8x256xf32>
    %cst_14 = arith.constant dense<0.000000e+00> : vector<8xf32>
    %18 = vector.multi_reduction <add>, %17, %cst_14 [1] : vector<8x256xf32> to vector<8xf32>
    %c0_15 = arith.constant 0 : index
    %c0_16 = arith.constant 0 : index
    %19 = memref.load %arg7[%c0_15, %c0_16] : memref<1x1xf32, #tpu.memory_space<smem>>
    %20 = vector.broadcast %19 : f32 to vector<8xf32>
    %21 = arith.addf %18, %20 : vector<8xf32>
    %22 = vector.shape_cast %21 : vector<8xf32> to vector<1x1x8xf32>
    %c0_17 = arith.constant 0 : index
    %c0_18 = arith.constant 0 : index
    %c0_19 = arith.constant 0 : index
    %23 = vector.load %arg8[%c0_17, %c0_18, %c0_19] : memref<1x1x8xf32, #tpu.memory_space<vmem>>, vector<1x1x8xf32>
    tpu.vector_store %arg8[%c0_17, %c0_18, %c0_19], %22 {strides = array<i32>} : memref<1x1x8xf32, #tpu.memory_space<vmem>>, vector<1x1x8xf32>,
    return
  }
  func.func @transform_0(%arg0: i32) -> (i32, i32) {
    %c0_i32 = arith.constant 0 : i32
    %c0_i32_0 = arith.constant 0 : i32
    return %arg0, %c0_i32 : i32, i32
  }
  func.func @transform_1(%arg0: i32) -> (i32, i32) {
    %c0_i32 = arith.constant 0 : i32
    %c0_i32_0 = arith.constant 0 : i32
    %c0_i32_1 = arith.constant 0 : i32
    return %c0_i32, %c0_i32_0 : i32, i32
  }
  func.func @transform_2(%arg0: i32) -> (i32, i32) {
    %c0_i32 = arith.constant 0 : i32
    %c0_i32_0 = arith.constant 0 : i32
    %c0_i32_1 = arith.constant 0 : i32
    return %c0_i32, %c0_i32_0 : i32, i32
  }
  func.func @transform_3(%arg0: i32) -> (i32, i32) {
    %c0_i32 = arith.constant 0 : i32
    %c0_i32_0 = arith.constant 0 : i32
    %c0_i32_1 = arith.constant 0 : i32
    return %c0_i32, %c0_i32_0 : i32, i32
  }
  func.func @transform_4(%arg0: i32) -> (i32, i32) {
    %c0_i32 = arith.constant 0 : i32
    %c0_i32_0 = arith.constant 0 : i32
    %c0_i32_1 = arith.constant 0 : i32
    return %c0_i32, %c0_i32_0 : i32, i32
  }
  func.func @transform_5(%arg0: i32) -> (i32, i32) {
    %c0_i32 = arith.constant 0 : i32
    %c0_i32_0 = arith.constant 0 : i32
    %c0_i32_1 = arith.constant 0 : i32
    return %c0_i32, %c0_i32_0 : i32, i32
  }
  func.func @transform_6(%arg0: i32) -> (i32, i32) {
    %c0_i32 = arith.constant 0 : i32
    %c0_i32_0 = arith.constant 0 : i32
    %c0_i32_1 = arith.constant 0 : i32
    return %c0_i32, %c0_i32_0 : i32, i32
  }
  func.func @transform_7(%arg0: i32) -> (i32, i32, i32) {
    %c0_i32 = arith.constant 0 : i32
    %c0_i32_0 = arith.constant 0 : i32
    %c0_i32_1 = arith.constant 0 : i32
    return %arg0, %c0_i32, %c0_i32_0 : i32, i32, i32
  }
}

</mosaic_0001>

<llo_original>
// kernel: tpu_custom_call.1
$region0: #{tpu_custom_call.1}
  #allocation0 [shape = 'u32[]', space=smem, size = 0x4, offset = 0x4, fixed_abs, tag = 'smem constant byte address 0x4 - core index']
  #allocation1 [shape = 'u32[72,128]{1,0:T(1,128)}', space=vmem, size = 0x9000, scoped, tag = 'internal scratch']
  #allocation2 [shape = 'f32[1,1]{1,0:T(1,128)S(6)}', space=smem, size = 0x200, scoped, tag = 'scoped memory for tpu_custom_call.1']
  %s0 = inlined_call_operand.hbm [shape: f32[8,24], index: 0, kind: input, shape index: {}]
  %s1 = inlined_call_operand.hbm [shape: f32[24,256], index: 1, kind: input, shape index: {}]
  %s2 = inlined_call_operand.vmem [shape: f32[1,256], index: 2, kind: input, shape index: {}]
  %s3 = inlined_call_operand.hbm [shape: f32[256,256], index: 3, kind: input, shape index: {}]
  %s4 = inlined_call_operand.vmem [shape: f32[1,256], index: 4, kind: input, shape index: {}]
  %s5 = inlined_call_operand.vmem [shape: f32[1,256], index: 5, kind: input, shape index: {}]
  %s6 = inlined_call_operand.<no memory space> [shape: f32[1,1], index: 6, kind: input, shape index: {}]
  %s7 = inlined_call_operand.hbm [shape: f32[1,1,8], index: 7, kind: output, shape index: {}]
  %s8 = sld [smem:[#allocation0]]
  $region50: #{tpu_custom_call.1} parent=0
    _
  %s10 = ssub.s32 1, %s8
  %s11 = scalar_select 0, %s10, %s8
  %12 = sst [smem:[#allocation2]] %s6
  $region1: #{tpu_custom_call.1} parent=0
    #allocation3 [shape = 'u8[4096]{0}', space=vmem, size = 0x1000, scoped, tag = 'input window, operand 0, single buffered']
    #allocation4 [shape = 's32[1]{0}', space=sflag, size = 0x4, scoped, tag = 'scoped memory for tpu_custom_call.1']
    #allocation5 [shape = 's32[1]{0}', space=sflag, size = 0x4, scoped, tag = 'scoped memory for tpu_custom_call.1']
    #allocation6 [shape = 'u8[24576]{0}', space=vmem, size = 0x6000, scoped, tag = 'input window, operand 1, single buffered']
    #allocation7 [shape = 's32[1]{0}', space=sflag, size = 0x4, scoped, tag = 'scoped memory for tpu_custom_call.1']
    #allocation8 [shape = 'u8[262144]{0}', space=vmem, size = 0x40000, scoped, tag = 'input window, operand 3, single buffered']
    #allocation9 [shape = 'u8[512]{0}', space=vmem, size = 0x400, scoped, tag = 'output window, operand 0, single buffered']
    %13 = vsyncpa [#allocation4], 0
    %14 = vsyncpa [#allocation7], 0
    %15 = vsyncpa [#allocation5], 0
    // Predicated region
    $region2: #{tpu_custom_call.1} parent=1 // pred_check
      _
    $region3: #{tpu_custom_call.1} parent=1 // pred_check_branch
      %17 = sbr.rel (0) target = $region5
    $region4: #{tpu_custom_call.1} parent=1 // pred_region
      %19 = vsyncadd [#allocation4], 0
      %s21 = sshll.u32 %s0, 4
      %s22 = int_to_ptr.hbm [resolvable:$true] %s21
      %s23 = sshll.u32 [#allocation3], 4
      %s24 = int_to_ptr.vmem [resolvable:$true] %s23
      %26 = dma.hbm_to_vmem [thread:$0]  %s22, 128, %s24, [#allocation4]
    $region5: #{tpu_custom_call.1} parent=1 // pred_fallthru
      _
    // Predicated region
    $region6: #{tpu_custom_call.1} parent=1 // pred_check
      _
    $region7: #{tpu_custom_call.1} parent=1 // pred_check_branch
      %28 = sbr.rel (0) target = $region9
    $region8: #{tpu_custom_call.1} parent=1 // pred_region
      %30 = vsyncadd [#allocation7], 0
      %s31 = sshll.u32 %s1, 4
      %s32 = int_to_ptr.hbm [resolvable:$true] %s31
      %s33 = sshll.u32 [#allocation6], 4
      %s34 = int_to_ptr.vmem [resolvable:$true] %s33
      %39 = dma.hbm_to_vmem [thread:$0]  %s32, 768, %s34, [#allocation7], 256, 256, 16
    $region9: #{tpu_custom_call.1} parent=1 // pred_fallthru
      _
    // Predicated region
    $region10: #{tpu_custom_call.1} parent=1 // pred_check
      _
    $region11: #{tpu_custom_call.1} parent=1 // pred_check_branch
      %41 = sbr.rel (0) target = $region13
    $region12: #{tpu_custom_call.1} parent=1 // pred_region
      _
    $region13: #{tpu_custom_call.1} parent=1 // pred_fallthru
      _
    // Predicated region
    $region14: #{tpu_custom_call.1} parent=1 // pred_check
      _
    $region15: #{tpu_custom_call.1} parent=1 // pred_check_branch
      %43 = sbr.rel (0) target = $region17
    $region16: #{tpu_custom_call.1} parent=1 // pred_region
      %45 = vsyncadd [#allocation7], 0
      %s46 = sshll.u32 %s3, 4
      %s47 = int_to_ptr.hbm [resolvable:$true] %s46
      %s48 = sshll.u32 [#allocation8], 4
      %s49 = int_to_ptr.vmem [resolvable:$true] %s48
      %54 = dma.hbm_to_vmem [thread:$0]  %s47, 8192, %s49, [#allocation7], 256, 256, 16
    $region17: #{tpu_custom_call.1} parent=1 // pred_fallthru
      _
    // Predicated region
    $region18: #{tpu_custom_call.1} parent=1 // pred_check
      _
    $region19: #{tpu_custom_call.1} parent=1 // pred_check_branch
      %56 = sbr.rel (0) target = $region21
    $region20: #{tpu_custom_call.1} parent=1 // pred_region
      _
    $region21: #{tpu_custom_call.1} parent=1 // pred_fallthru
      _
    // Predicated region
    $region22: #{tpu_custom_call.1} parent=1 // pred_check
      _
    $region23: #{tpu_custom_call.1} parent=1 // pred_check_branch
      %58 = sbr.rel (0) target = $region25
    $region24: #{tpu_custom_call.1} parent=1 // pred_region
      _
    $region25: #{tpu_custom_call.1} parent=1 // pred_fallthru
      _
    // Predicated region
    $region26: #{tpu_custom_call.1} parent=1 // pred_check
      _
    $region27: #{tpu_custom_call.1} parent=1 // pred_check_branch
      %60 = sbr.rel (0) target = $region29
    $region28: #{tpu_custom_call.1} parent=1 // pred_region
      _
    $region29: #{tpu_custom_call.1} parent=1 // pred_fallthru
      _
    // Predicated region
    $region30: #{tpu_custom_call.1} parent=1 // pred_check
      _
    $region31: #{tpu_custom_call.1} parent=1 // pred_check_branch
      %62 = sbr.rel (0) target = $region33
    $region32: #{tpu_custom_call.1} parent=1 // pred_region
      %64 = dma.done [#allocation4], 128
    $region33: #{tpu_custom_call.1} parent=1 // pred_fallthru
      _
    // Predicated region
    $region34: #{tpu_custom_call.1} parent=1 // pred_check
      _
    $region35: #{tpu_custom_call.1} parent=1 // pred_check_branch
      %66 = sbr.rel (0) target = $region37
    $region36: #{tpu_custom_call.1} parent=1 // pred_region
      %68 = dma.done [#allocation7], 768
    $region37: #{tpu_custom_call.1} parent=1 // pred_fallthru
      _
    // Predicated region
    $region38: #{tpu_custom_call.1} parent=1 // pred_check
      _
    $region39: #{tpu_custom_call.1} parent=1 // pred_check_branch
      %70 = sbr.rel (0) target = $region41
    $region40: #{tpu_custom_call.1} parent=1 // pred_region
      %72 = dma.done [#allocation7], 8192
    $region41: #{tpu_custom_call.1} parent=1 // pred_fallthru
      _
    %v73 = vld [vmem:[#allocation3] sm:$0xff]
    %v74 = vld [vmem:[#allocation6] sm:$0xff]
    %v75 = vld [vmem:[#allocation6 + $0x8] sm:$0xff]
    %v76 = vld [vmem:[#allocation6 + $0x10] sm:$0xff]
    %v77 = vld [vmem:[#allocation6 + $0x18] sm:$0xff]
    %v78 = vld [vmem:[#allocation6 + $0x20] sm:$0xff]
    %v79 = vld [vmem:[#allocation6 + $0x28] sm:$0xff]
    %v80 = vld [vmem:[%s2] sm:$0x3]
    %v82 = vperm.slane %v80, 0
    %v83 = vperm.slane %v80, 1
    %vm86 = vcmask 195584
    %v88 = vsel %vm86, %v73, 0
    %90 = vmatpush.msra.mxu0 0.0
    %91 = vmatpush.msra.mxu0 0.0
    %92 = vmatpush.msra.mxu0 0.0
    %93 = vmatpush.msra.mxu0 0.0
    %94 = vmatpush.msra.mxu0 0.0
    %95 = vmatpush.msra.mxu0 0.0
    %96 = vmatpush.msra.mxu0 0.0
    %97 = vmatpush.msra.mxu0 0.0
    %98 = vmatpush.msra.mxu0 0.0
    %99 = vmatpush.msra.mxu0 0.0
    %100 = vmatpush.msra.mxu0 0.0
    %101 = vmatpush.msra.mxu0 0.0
    %102 = vmatpush.msra.mxu0 0.0
    %103 = vmatpush.msra.mxu0 %v78
    %104 = vmatpush.msra.mxu0 %v76
    %105 = vmatpush.msra.mxu0 %v74
    %106 = vmatmul.f32.gmra.mxu0 %v88
    %v107 = vpop.f32.mrf.mxu0
    %v108 = vadd.f32 %v82, %v107
    %109 = vdwg.mxu0
    %110 = vmatpush.msra.mxu0 0.0
    %111 = vmatpush.msra.mxu0 0.0
    %112 = vmatpush.msra.mxu0 0.0
    %113 = vmatpush.msra.mxu0 0.0
    %114 = vmatpush.msra.mxu0 0.0
    %115 = vmatpush.msra.mxu0 0.0
    %116 = vmatpush.msra.mxu0 0.0
    %117 = vmatpush.msra.mxu0 0.0
    %118 = vmatpush.msra.mxu0 0.0
    %119 = vmatpush.msra.mxu0 0.0
    %120 = vmatpush.msra.mxu0 0.0
    %121 = vmatpush.msra.mxu0 0.0
    %122 = vmatpush.msra.mxu0 0.0
    %123 = vmatpush.msra.mxu0 %v79
    %124 = vmatpush.msra.mxu0 %v77
    %125 = vmatpush.msra.mxu0 %v75
    %126 = vmatmul.f32.gmra.mxu0 %v88
    %v127 = vpop.f32.mrf.mxu0
    %v128 = vadd.f32 %v83, %v127
    %129 = vdwg.mxu0
    %v130 = vmax.f32 %v108, 0.0
    %v131 = vmax.f32 %v128, 0.0
    %v132 = vld [vmem:[#allocation8] sm:$0xff]
    %v133 = vld [vmem:[#allocation8 + $0x8] sm:$0xff]
    %v134 = vld [vmem:[#allocation8 + $0x10] sm:$0xff]
    %v135 = vld [vmem:[#allocation8 + $0x18] sm:$0xff]
    %v136 = vld [vmem:[#allocation8 + $0x20] sm:$0xff]
    %v137 = vld [vmem:[#allocation8 + $0x28] sm:$0xff]
    %v138 = vld [vmem:[#allocation8 + $0x30] sm:$0xff]
    %v139 = vld [vmem:[#allocation8 + $0x38] sm:$0xff]
    %v140 = vld [vmem:[#allocation8 + $0x40] sm:$0xff]
    %v141 = vld [vmem:[#allocation8 + $0x48] sm:$0xff]
    %v142 = vld [vmem:[#allocation8 + $0x50] sm:$0xff]
    %v143 = vld [vmem:[#allocation8 + $0x58] sm:$0xff]
    %v144 = vld [vmem:[#allocation8 + $0x60] sm:$0xff]
    %v145 = vld [vmem:[#allocation8 + $0x68] sm:$0xff]
    %v146 = vld [vmem:[#allocation8 + $0x70] sm:$0xff]
    %v147 = vld [vmem:[#allocation8 + $0x78] sm:$0xff]
    %v148 = vld [vmem:[#allocation8 + $0x80] sm:$0xff]
    %v149 = vld [vmem:[#allocation8 + $0x88] sm:$0xff]
    %v150 = vld [vmem:[#allocation8 + $0x90] sm:$0xff]
    %v151 = vld [vmem:[#allocation8 + $0x98] sm:$0xff]
    %v152 = vld [vmem:[#allocation8 + $0xa0] sm:$0xff]
    %v153 = vld [vmem:[#allocation8 + $0xa8] sm:$0xff]
    %v154 = vld [vmem:[#allocation8 + $0xb0] sm:$0xff]
    %v155 = vld [vmem:[#allocation8 + $0xb8] sm:$0xff]
    %v156 = vld [vmem:[#allocation8 + $0xc0] sm:$0xff]
    %v157 = vld [vmem:[#allocation8 + $0xc8] sm:$0xff]
    %v158 = vld [vmem:[#allocation8 + $0xd0] sm:$0xff]
    %v159 = vld [vmem:[#allocation8 + $0xd8] sm:$0xff]
    %v160 = vld [vmem:[#allocation8 + $0xe0] sm:$0xff]
    %v161 = vld [vmem:[#allocation8 + $0xe8] sm:$0xff]
    %v162 = vld [vmem:[#allocation8 + $0xf0] sm:$0xff]
    %v163 = vld [vmem:[#allocation8 + $0xf8] sm:$0xff]
    %v164 = vld [vmem:[#allocation8 + $0x100] sm:$0xff]
    %v165 = vld [vmem:[#allocation8 + $0x108] sm:$0xff]
    %v166 = vld [vmem:[#allocation8 + $0x110] sm:$0xff]
    %v167 = vld [vmem:[#allocation8 + $0x118] sm:$0xff]
    %v168 = vld [vmem:[#allocation8 + $0x120] sm:$0xff]
    %v169 = vld [vmem:[#allocation8 + $0x128] sm:$0xff]
    %v170 = vld [vmem:[#allocation8 + $0x130] sm:$0xff]
    %v171 = vld [vmem:[#allocation8 + $0x138] sm:$0xff]
    %v172 = vld [vmem:[#allocation8 + $0x140] sm:$0xff]
    %v173 = vld [vmem:[#allocation8 + $0x148] sm:$0xff]
    %v174 = vld [vmem:[#allocation8 + $0x150] sm:$0xff]
    %v175 = vld [vmem:[#allocation8 + $0x158] sm:$0xff]
    %v176 = vld [vmem:[#allocation8 + $0x160] sm:$0xff]
    %v177 = vld [vmem:[#allocation8 + $0x168] sm:$0xff]
    %v178 = vld [vmem:[#allocation8 + $0x170] sm:$0xff]
    %v179 = vld [vmem:[#allocation8 + $0x178] sm:$0xff]
    %v180 = vld [vmem:[#allocation8 + $0x180] sm:$0xff]
    %v181 = vld [vmem:[#allocation8 + $0x188] sm:$0xff]
    %v182 = vld [vmem:[#allocation8 + $0x190] sm:$0xff]
    %v183 = vld [vmem:[#allocation8 + $0x198] sm:$0xff]
    %v184 = vld [vmem:[#allocation8 + $0x1a0] sm:$0xff]
    %v185 = vld [vmem:[#allocation8 + $0x1a8] sm:$0xff]
    %v186 = vld [vmem:[#allocation8 + $0x1b0] sm:$0xff]
    %v187 = vld [vmem:[#allocation8 + $0x1b8] sm:$0xff]
    %v188 = vld [vmem:[#allocation8 + $0x1c0] sm:$0xff]
    %v189 = vld [vmem:[#allocation8 + $0x1c8] sm:$0xff]
    %v190 = vld [vmem:[#allocation8 + $0x1d0] sm:$0xff]
    %v191 = vld [vmem:[#allocation8 + $0x1d8] sm:$0xff]
    %v192 = vld [vmem:[#allocation8 + $0x1e0] sm:$0xff]
    %v193 = vld [vmem:[#allocation8 + $0x1e8] sm:$0xff]
    %v194 = vld [vmem:[#allocation8 + $0x1f0] sm:$0xff]
    %v195 = vld [vmem:[#allocation8 + $0x1f8] sm:$0xff]
    %v196 = vld [vmem:[%s4] sm:$0x3]
    %v198 = vperm.slane %v196, 0
    %v199 = vperm.slane %v196, 1
    %202 = vmatpush.msra.mxu0 %v162
    %203 = vmatpush.msra.mxu0 %v160
    %204 = vmatpush.msra.mxu0 %v158
    %205 = vmatpush.msra.mxu0 %v156
    %206 = vmatpush.msra.mxu0 %v154
    %207 = vmatpush.msra.mxu0 %v152
    %208 = vmatpush.msra.mxu0 %v150
    %209 = vmatpush.msra.mxu0 %v148
    %210 = vmatpush.msra.mxu0 %v146
    %211 = vmatpush.msra.mxu0 %v144
    %212 = vmatpush.msra.mxu0 %v142
    %213 = vmatpush.msra.mxu0 %v140
    %214 = vmatpush.msra.mxu0 %v138
    %215 = vmatpush.msra.mxu0 %v136
    %216 = vmatpush.msra.mxu0 %v134
    %217 = vmatpush.msra.mxu0 %v132
    %218 = vmatmul.f32.gmra.mxu0 %v130
    %v219 = vpop.f32.mrf.mxu0
    %v220 = vadd.f32 %v198, %v219
    %221 = vdwg.mxu0
    %222 = vmatpush.msra.mxu0 %v194
    %223 = vmatpush.msra.mxu0 %v192
    %224 = vmatpush.msra.mxu0 %v190
    %225 = vmatpush.msra.mxu0 %v188
    %226 = vmatpush.msra.mxu0 %v186
    %227 = vmatpush.msra.mxu0 %v184
    %228 = vmatpush.msra.mxu0 %v182
    %229 = vmatpush.msra.mxu0 %v180
    %230 = vmatpush.msra.mxu0 %v178
    %231 = vmatpush.msra.mxu0 %v176
    %232 = vmatpush.msra.mxu0 %v174
    %233 = vmatpush.msra.mxu0 %v172
    %234 = vmatpush.msra.mxu0 %v170
    %235 = vmatpush.msra.mxu0 %v168
    %236 = vmatpush.msra.mxu0 %v166
    %237 = vmatpush.msra.mxu0 %v164
    %238 = vmatmul.f32.gmra.mxu0 %v131
    %v239 = vpop.f32.mrf.mxu0
    %v240 = vadd.f32 %v220, %v239
    %241 = vdwg.mxu0
    %242 = vmatpush.msra.mxu0 %v163
    %243 = vmatpush.msra.mxu0 %v161
    %244 = vmatpush.msra.mxu0 %v159
    %245 = vmatpush.msra.mxu0 %v157
    %246 = vmatpush.msra.mxu0 %v155
    %247 = vmatpush.msra.mxu0 %v153
    %248 = vmatpush.msra.mxu0 %v151
    %249 = vmatpush.msra.mxu0 %v149
    %250 = vmatpush.msra.mxu0 %v147
    %251 = vmatpush.msra.mxu0 %v145
    %252 = vmatpush.msra.mxu0 %v143
    %253 = vmatpush.msra.mxu0 %v141
    %254 = vmatpush.msra.mxu0 %v139
    %255 = vmatpush.msra.mxu0 %v137
    %256 = vmatpush.msra.mxu0 %v135
    %257 = vmatpush.msra.mxu0 %v133
    %258 = vmatmul.f32.gmra.mxu0 %v130
    %v259 = vpop.f32.mrf.mxu0
    %v260 = vadd.f32 %v199, %v259
    %261 = vdwg.mxu0
    %262 = vmatpush.msra.mxu0 %v195
    %263 = vmatpush.msra.mxu0 %v193
    %264 = vmatpush.msra.mxu0 %v191
    %265 = vmatpush.msra.mxu0 %v189
    %266 = vmatpush.msra.mxu0 %v187
    %267 = vmatpush.msra.mxu0 %v185
    %268 = vmatpush.msra.mxu0 %v183
    %269 = vmatpush.msra.mxu0 %v181
    %270 = vmatpush.msra.mxu0 %v179
    %271 = vmatpush.msra.mxu0 %v177
    %272 = vmatpush.msra.mxu0 %v175
    %273 = vmatpush.msra.mxu0 %v173
    %274 = vmatpush.msra.mxu0 %v171
    %275 = vmatpush.msra.mxu0 %v169
    %276 = vmatpush.msra.mxu0 %v167
    %277 = vmatpush.msra.mxu0 %v165
    %278 = vmatmul.f32.gmra.mxu0 %v131
    %v279 = vpop.f32.mrf.mxu0
    %v280 = vadd.f32 %v260, %v279
    %281 = vdwg.mxu0
    %v282 = vmax.f32 %v240, 0.0
    %v283 = vmax.f32 %v280, 0.0
    %v284 = vld [vmem:[%s5] sm:$0x3]
    %v286 = vperm.slane %v284, 0
    %v287 = vperm.slane %v284, 1
    %v290 = vmul.f32 %v282, %v286
    %v291 = vmul.f32 %v283, %v287
    %v292 = vadd.f32 %v290, %v291
    %293 = vadd.xlane.f32.xlu0 %v292
    %v294 = vpop.xlane.xlu0 %293
    %s295 = sld [smem:[#allocation2]]
    %v296 = vstv %s295
    %v297 = vadd.f32 %v294, %v296
    %v299 = vlaneseq
    %v300 = vand.u32 %v299, 127
    %v301 = vperm.slane %v297, %v300
    %vm303 = vcmask 57344
    %304 = vst.msk [vmem:[#allocation9] sm:$0x1] %vm303, %v301
    // Predicated region
    $region42: #{tpu_custom_call.1} parent=1 // pred_check
      _
    $region43: #{tpu_custom_call.1} parent=1 // pred_check_branch
      %306 = sbr.rel (0) target = $region45
    $region44: #{tpu_custom_call.1} parent=1 // pred_region
      %308 = vsyncadd [#allocation5], 0
      %s310 = sshll.u32 [#allocation9], 4
      %s311 = int_to_ptr.vmem [resolvable:$true] %s310
      %s312 = sshll.u32 %s7, 4
      %s313 = int_to_ptr.hbm [resolvable:$true] %s312
      %315 = dma.vmem_to_hbm [thread:$0]  %s311, 16, %s313, [#allocation5]
    $region45: #{tpu_custom_call.1} parent=1 // pred_fallthru
      _
    // Predicated region
    $region46: #{tpu_custom_call.1} parent=1 // pred_check
      _
    $region47: #{tpu_custom_call.1} parent=1 // pred_check_branch
      %317 = sbr.rel (0) target = $region49
    $region48: #{tpu_custom_call.1} parent=1 // pred_region
      %319 = dma.done [#allocation5], 16
    $region49: #{tpu_custom_call.1} parent=1 // pred_fallthru
      _
    %320 = vsyncpa [#allocation4], 1
    %321 = vsyncpa [#allocation7], 1
    %322 = vsyncpa [#allocation5], 1

</llo_original>
